<compile_context>
chip_gen: v7x
topology: tpu7x:2x2x1
jax: 0.10.0
libtpu: 0.0.40
codegen_flags: <defaults>
</compile_context>

<pallas_src>
import jax
import jax.numpy as jnp
from jax.experimental import pallas as pl
from jax.experimental.pallas import tpu as pltpu

HIDDEN_LAYER = 24
IN_FEATURES = 4
HIDDEN2 = 16
OUT_FEATURES = 2

LANE = 128
TB_MAX = 16384  # max batch tile (columns); ~210 B/sample keeps this well under VMEM


def _round_up(a, m):
    return ((a + m - 1) // m) * m


def _cdiv(a, b):
    return (a + b - 1) // b


def _choose_tiling(batch, tb_max=TB_MAX):
    """Pick (tb, n_tiles, padded_batch).

    - batch is padded up to a multiple of 128 (lane width) so stores stay unmasked.
    - tb is a multiple of 128, at most tb_max.
    - when there is more than one lane-tile of work we force >= 2 grid steps so the
      'parallel' batch axis can shard across both v7x TensorCores.
    """
    b128 = _round_up(batch, LANE)
    n = _cdiv(b128, tb_max)
    if n < 2 and b128 > LANE:
        n = 2
    tb = _round_up(_cdiv(b128, n), LANE)
    n_tiles = _cdiv(b128, tb)
    return tb, n_tiles, n_tiles * tb


def mlp_kernel(x_ref, w1_ref, b1_ref, w2_ref, b2_ref, w3_ref, b3_ref, o_ref):
    # x: bf16 (4, TB) -- batch in the lane dimension, fully lane-dense.
    x = x_ref[...]

    # Layer 1: (24,4) @ (4,TB) -> f32 accum, +bias, ReLU (all f32 on the VPU).
    h1 = jnp.dot(w1_ref[...], x, preferred_element_type=jnp.float32)
    h1 = jnp.maximum(h1 + b1_ref[...], 0.0)

    # Layer 2: (16,24) @ (24,TB); feed the MXU bf16 to stay single-pass.
    h2 = jnp.dot(w2_ref[...], h1.astype(jnp.bfloat16),
                 preferred_element_type=jnp.float32)
    h2 = jnp.maximum(h2 + b2_ref[...], 0.0)

    # Layer 3: (2,16) @ (16,TB) + bias, no activation.
    out = jnp.dot(w3_ref[...], h2.astype(jnp.bfloat16),
                  preferred_element_type=jnp.float32)
    o_ref[...] = (out + b3_ref[...]).astype(o_ref.dtype)


def network_forward_feature_major(x_t, params, *, tb_max=TB_MAX):
    """Forward pass on a feature-major slab.

    x_t: (4, B) float32 or bfloat16 (lane-dense layout; no wrapper transpose needed)
    returns (2, B) float32
    """
    B = x_t.shape[1]
    tb, n_tiles, b_pad = _choose_tiling(B, tb_max)

    # bf16 input stream; padding columns are zeros (their garbage output is sliced off).
    x_t = jnp.pad(x_t.astype(jnp.bfloat16), ((0, 0), (0, b_pad - B)))

    bf16 = jnp.bfloat16
    w1 = params["w1"].astype(bf16)
    w2 = params["w2"].astype(bf16)
    w3 = params["w3"].astype(bf16)
    b1, b2, b3 = params["b1"], params["b2"], params["b3"]  # biases stay f32

    const = lambda a: pl.BlockSpec(a.shape, lambda i: (0, 0))  # VMEM-resident weights

    out_t = pl.pallas_call(
        mlp_kernel,
        out_shape=jax.ShapeDtypeStruct((OUT_FEATURES, b_pad), jnp.float32),
        grid=(n_tiles,),
        in_specs=[
            pl.BlockSpec((IN_FEATURES, tb), lambda i: (0, i)),
            const(w1), const(b1),
            const(w2), const(b2),
            const(w3), const(b3),
        ],
        out_specs=pl.BlockSpec((OUT_FEATURES, tb), lambda i: (0, i)),
        compiler_params=pltpu.CompilerParams(
            dimension_semantics=("parallel",),
        ),
    )(x_t, w1, b1, w2, b2, w3, b3)

    return out_t[:, :B]


def network_forward(x, params, *, tb_max=TB_MAX):
    """PyTorch-style interface: x (B, 4) float32 -> (B, 2) float32.

    The transpose to feature-major is fused with the bf16 cast (half the write
    traffic); producers that can emit (4, B) directly should call
    network_forward_feature_major and skip this pass entirely.
    """
    x_t = x.astype(jnp.bfloat16).T
    out_t = network_forward_feature_major(x_t, params, tb_max=tb_max)
    return out_t.T


def init_params(key):
    """Deterministic init mimicking PyTorch nn.Linear default:
    U(-1/sqrt(fan_in), 1/sqrt(fan_in)) for both weight and bias.
    Weights stored as (out, in) like torch; biases as (out, 1)."""
    def linear(key, fan_in, fan_out):
        kw, kb = jax.random.split(key)
        bound = 1.0 / jnp.sqrt(fan_in)
        w = jax.random.uniform(kw, (fan_out, fan_in), jnp.float32, -bound, bound)
        b = jax.random.uniform(kb, (fan_out, 1), jnp.float32, -bound, bound)
        return w, b

    k1, k2, k3 = jax.random.split(key, 3)
    w1, b1 = linear(k1, IN_FEATURES, HIDDEN_LAYER)
    w2, b2 = linear(k2, HIDDEN_LAYER, HIDDEN2)
    w3, b3 = linear(k3, HIDDEN2, OUT_FEATURES)
    return {"w1": w1, "b1": b1, "w2": w2, "b2": b2, "w3": w3, "b3": b3}


def reference_forward(x, p):
    """Reference mirroring the kernel's bf16-input / f32-accumulate arithmetic."""
    bf = jnp.bfloat16
    xt = x.astype(bf).T
    h1 = jnp.maximum(
        jnp.dot(p["w1"].astype(bf), xt, preferred_element_type=jnp.float32) + p["b1"], 0.0)
    h2 = jnp.maximum(
        jnp.dot(p["w2"].astype(bf), h1.astype(bf),
                preferred_element_type=jnp.float32) + p["b2"], 0.0)
    out = jnp.dot(p["w3"].astype(bf), h2.astype(bf),
                  preferred_element_type=jnp.float32) + p["b3"]
    return out.T


if __name__ == "__main__":
    key = jax.random.PRNGKey(0)
    kx, kp = jax.random.split(key)

    B = 8  # small batch of CartPole-like observations (4 features each)
    x = jax.random.normal(kx, (B, IN_FEATURES), jnp.float32)
    params = init_params(kp)

    out = jax.jit(network_forward)(x, params)
    out = jax.block_until_ready(out)

    ref = reference_forward(x, params)
    assert out.shape == (B, OUT_FEATURES)
    assert jnp.allclose(out, ref, atol=1e-2, rtol=1e-2), "mismatch vs reference"

    print("KERNEL_OK")
</pallas_src>

<mosaic_0001>
module attributes {stable_mosaic.version = 11 : i64} {
  func.func @mlp_kernel(%arg0: i32, %arg1: memref<4x128xbf16, #tpu.memory_space<vmem>>, %arg2: memref<24x4xbf16, #tpu.memory_space<vmem>>, %arg3: memref<24x1xf32, #tpu.memory_space<vmem>>, %arg4: memref<16x24xbf16, #tpu.memory_space<vmem>>, %arg5: memref<16x1xf32, #tpu.memory_space<vmem>>, %arg6: memref<2x16xbf16, #tpu.memory_space<vmem>>, %arg7: memref<2x1xf32, #tpu.memory_space<vmem>>, %arg8: memref<2x128xf32, #tpu.memory_space<vmem>>) attributes {dimension_semantics = [#tpu.dimension_semantics<parallel>], iteration_bounds = array<i64: 1>, scalar_prefetch = 0 : i64, scratch_operands = 0 : i64, tpu.core_type = #tpu.core_type<tc>, window_params = [{transform_indices = @transform_0, window_bounds = array<i64: 4, 128>}, {pipeline_mode = #tpu.pipeline_mode<synchronous>, transform_indices = @transform_1, window_bounds = array<i64: 24, 4>}, {pipeline_mode = #tpu.pipeline_mode<synchronous>, transform_indices = @transform_2, window_bounds = array<i64: 24, 1>}, {pipeline_mode = #tpu.pipeline_mode<synchronous>, transform_indices = @transform_3, window_bounds = array<i64: 16, 24>}, {pipeline_mode = #tpu.pipeline_mode<synchronous>, transform_indices = @transform_4, window_bounds = array<i64: 16, 1>}, {pipeline_mode = #tpu.pipeline_mode<synchronous>, transform_indices = @transform_5, window_bounds = array<i64: 2, 16>}, {pipeline_mode = #tpu.pipeline_mode<synchronous>, transform_indices = @transform_6, window_bounds = array<i64: 2, 1>}, {transform_indices = @transform_7, window_bounds = array<i64: 2, 128>}]} {
    %c0 = arith.constant 0 : index
    %c0_0 = arith.constant 0 : index
    %0 = vector.load %arg1[%c0, %c0_0] : memref<4x128xbf16, #tpu.memory_space<vmem>>, vector<4x128xbf16>
    %c0_1 = arith.constant 0 : index
    %c0_2 = arith.constant 0 : index
    %1 = vector.load %arg2[%c0_1, %c0_2] : memref<24x4xbf16, #tpu.memory_space<vmem>>, vector<24x4xbf16>
    %cst = arith.constant dense<0.000000e+00> : vector<24x128xf32>
    %2 = tpu.matmul %1, %0, %cst {dimension_numbers = #tpu.dot_dimension_numbers<[1], [0], [0], [1], [0, 0, 1, 1], [], []>} : vector<24x4xbf16>, vector<4x128xbf16>, vector<24x128xf32> -> vector<24x128xf32>
    %c0_3 = arith.constant 0 : index
    %c0_4 = arith.constant 0 : index
    %3 = vector.load %arg3[%c0_3, %c0_4] : memref<24x1xf32, #tpu.memory_space<vmem>>, vector<24x1xf32>
    %4 = vector.broadcast %3 : vector<24x1xf32> to vector<24x128xf32>
    %5 = arith.addf %2, %4 : vector<24x128xf32>
    %cst_5 = arith.constant 0.000000e+00 : f32
    %6 = vector.broadcast %cst_5 : f32 to vector<24x128xf32>
    %7 = arith.maximumf %5, %6 : vector<24x128xf32>
    %c0_6 = arith.constant 0 : index
    %c0_7 = arith.constant 0 : index
    %8 = vector.load %arg4[%c0_6, %c0_7] : memref<16x24xbf16, #tpu.memory_space<vmem>>, vector<16x24xbf16>
    %9 = arith.truncf %7 : vector<24x128xf32> to vector<24x128xbf16>
    %cst_8 = arith.constant dense<0.000000e+00> : vector<16x128xf32>
    %10 = tpu.matmul %8, %9, %cst_8 {dimension_numbers = #tpu.dot_dimension_numbers<[1], [0], [0], [1], [0, 0, 1, 1], [], []>} : vector<16x24xbf16>, vector<24x128xbf16>, vector<16x128xf32> -> vector<16x128xf32>
    %c0_9 = arith.constant 0 : index
    %c0_10 = arith.constant 0 : index
    %11 = vector.load %arg5[%c0_9, %c0_10] : memref<16x1xf32, #tpu.memory_space<vmem>>, vector<16x1xf32>
    %12 = vector.broadcast %11 : vector<16x1xf32> to vector<16x128xf32>
    %13 = arith.addf %10, %12 : vector<16x128xf32>
    %cst_11 = arith.constant 0.000000e+00 : f32
    %14 = vector.broadcast %cst_11 : f32 to vector<16x128xf32>
    %15 = arith.maximumf %13, %14 : vector<16x128xf32>
    %c0_12 = arith.constant 0 : index
    %c0_13 = arith.constant 0 : index
    %16 = vector.load %arg6[%c0_12, %c0_13] : memref<2x16xbf16, #tpu.memory_space<vmem>>, vector<2x16xbf16>
    %17 = arith.truncf %15 : vector<16x128xf32> to vector<16x128xbf16>
    %cst_14 = arith.constant dense<0.000000e+00> : vector<2x128xf32>
    %18 = tpu.matmul %16, %17, %cst_14 {dimension_numbers = #tpu.dot_dimension_numbers<[1], [0], [0], [1], [0, 0, 1, 1], [], []>} : vector<2x16xbf16>, vector<16x128xbf16>, vector<2x128xf32> -> vector<2x128xf32>
    %c0_15 = arith.constant 0 : index
    %c0_16 = arith.constant 0 : index
    %19 = vector.load %arg7[%c0_15, %c0_16] : memref<2x1xf32, #tpu.memory_space<vmem>>, vector<2x1xf32>
    %20 = vector.broadcast %19 : vector<2x1xf32> to vector<2x128xf32>
    %21 = arith.addf %18, %20 : vector<2x128xf32>
    %c0_17 = arith.constant 0 : index
    %c0_18 = arith.constant 0 : index
    %22 = vector.load %arg8[%c0_17, %c0_18] : memref<2x128xf32, #tpu.memory_space<vmem>>, vector<2x128xf32>
    tpu.vector_store %arg8[%c0_17, %c0_18], %21 {strides = array<i32>} : memref<2x128xf32, #tpu.memory_space<vmem>>, vector<2x128xf32>,
    return
  }
  func.func @transform_0(%arg0: i32) -> (i32, i32) {
    %c0_i32 = arith.constant 0 : i32
    %c0_i32_0 = arith.constant 0 : i32
    return %c0_i32, %arg0 : i32, i32
  }
  func.func @transform_1(%arg0: i32) -> (i32, i32) {
    %c0_i32 = arith.constant 0 : i32
    %c0_i32_0 = arith.constant 0 : i32
    %c0_i32_1 = arith.constant 0 : i32
    return %c0_i32, %c0_i32_0 : i32, i32
  }
  func.func @transform_2(%arg0: i32) -> (i32, i32) {
    %c0_i32 = arith.constant 0 : i32
    %c0_i32_0 = arith.constant 0 : i32
    %c0_i32_1 = arith.constant 0 : i32
    return %c0_i32, %c0_i32_0 : i32, i32
  }
  func.func @transform_3(%arg0: i32) -> (i32, i32) {
    %c0_i32 = arith.constant 0 : i32
    %c0_i32_0 = arith.constant 0 : i32
    %c0_i32_1 = arith.constant 0 : i32
    return %c0_i32, %c0_i32_0 : i32, i32
  }
  func.func @transform_4(%arg0: i32) -> (i32, i32) {
    %c0_i32 = arith.constant 0 : i32
    %c0_i32_0 = arith.constant 0 : i32
    %c0_i32_1 = arith.constant 0 : i32
    return %c0_i32, %c0_i32_0 : i32, i32
  }
  func.func @transform_5(%arg0: i32) -> (i32, i32) {
    %c0_i32 = arith.constant 0 : i32
    %c0_i32_0 = arith.constant 0 : i32
    %c0_i32_1 = arith.constant 0 : i32
    return %c0_i32, %c0_i32_0 : i32, i32
  }
  func.func @transform_6(%arg0: i32) -> (i32, i32) {
    %c0_i32 = arith.constant 0 : i32
    %c0_i32_0 = arith.constant 0 : i32
    %c0_i32_1 = arith.constant 0 : i32
    return %c0_i32, %c0_i32_0 : i32, i32
  }
  func.func @transform_7(%arg0: i32) -> (i32, i32) {
    %c0_i32 = arith.constant 0 : i32
    %c0_i32_0 = arith.constant 0 : i32
    return %c0_i32, %arg0 : i32, i32
  }
}

</mosaic_0001>

<llo_original>
// kernel: network_forward.1
$region0: #{network_forward.1}
  #allocation0 [shape = 'u32[]', space=smem, size = 0x4, offset = 0x4, fixed_abs, tag = 'smem constant byte address 0x4 - core index']
  #allocation1 [shape = 'u32[144,128]{1,0:T(1,128)}', space=vmem, size = 0x12000, scoped, tag = 'internal scratch']
  %s0 = inlined_call_operand.vmem [shape: bf16[4,128], index: 0, kind: input, shape index: {}]
  %s1 = inlined_call_operand.vmem [shape: bf16[24,4], index: 1, kind: input, shape index: {}]
  %s2 = inlined_call_operand.vmem [shape: f32[24,1], index: 2, kind: input, shape index: {}]
  %s3 = inlined_call_operand.vmem [shape: bf16[16,24], index: 3, kind: input, shape index: {}]
  %s4 = inlined_call_operand.vmem [shape: f32[16,1], index: 4, kind: input, shape index: {}]
  %s5 = inlined_call_operand.vmem [shape: bf16[2,16], index: 5, kind: input, shape index: {}]
  %s6 = inlined_call_operand.vmem [shape: f32[2,1], index: 6, kind: input, shape index: {}]
  %s7 = inlined_call_operand.vmem [shape: f32[2,128], index: 7, kind: output, shape index: {}]
  %s8 = sld [smem:[#allocation0]]
  $region38: #{network_forward.1} parent=0
    _
  %s10 = ssub.s32 1, %s8
  %s11 = scalar_select 0, %s10, %s8
  // Predicated region
  $region2: #{network_forward.1} parent=0 // pred_check
    _
  $region3: #{network_forward.1} parent=0 // pred_check_branch
    %13 = sbr.rel (0) target = $region5
  $region4: #{network_forward.1} parent=0 // pred_region
    _
  $region5: #{network_forward.1} parent=0 // pred_fallthru
    _
  // Predicated region
  $region6: #{network_forward.1} parent=0 // pred_check
    _
  $region7: #{network_forward.1} parent=0 // pred_check_branch
    %15 = sbr.rel (0) target = $region9
  $region8: #{network_forward.1} parent=0 // pred_region
    _
  $region9: #{network_forward.1} parent=0 // pred_fallthru
    _
  // Predicated region
  $region10: #{network_forward.1} parent=0 // pred_check
    _
  $region11: #{network_forward.1} parent=0 // pred_check_branch
    %17 = sbr.rel (0) target = $region13
  $region12: #{network_forward.1} parent=0 // pred_region
    _
  $region13: #{network_forward.1} parent=0 // pred_fallthru
    _
  // Predicated region
  $region14: #{network_forward.1} parent=0 // pred_check
    _
  $region15: #{network_forward.1} parent=0 // pred_check_branch
    %19 = sbr.rel (0) target = $region17
  $region16: #{network_forward.1} parent=0 // pred_region
    _
  $region17: #{network_forward.1} parent=0 // pred_fallthru
    _
  // Predicated region
  $region18: #{network_forward.1} parent=0 // pred_check
    _
  $region19: #{network_forward.1} parent=0 // pred_check_branch
    %21 = sbr.rel (0) target = $region21
  $region20: #{network_forward.1} parent=0 // pred_region
    _
  $region21: #{network_forward.1} parent=0 // pred_fallthru
    _
  // Predicated region
  $region22: #{network_forward.1} parent=0 // pred_check
    _
  $region23: #{network_forward.1} parent=0 // pred_check_branch
    %23 = sbr.rel (0) target = $region25
  $region24: #{network_forward.1} parent=0 // pred_region
    _
  $region25: #{network_forward.1} parent=0 // pred_fallthru
    _
  // Predicated region
  $region26: #{network_forward.1} parent=0 // pred_check
    _
  $region27: #{network_forward.1} parent=0 // pred_check_branch
    %25 = sbr.rel (0) target = $region29
  $region28: #{network_forward.1} parent=0 // pred_region
    _
  $region29: #{network_forward.1} parent=0 // pred_fallthru
    _
  %v27 = vld [vmem:[%s0] sm:$0x3]
  %v28 = vld [vmem:[%s1] sm:$0xf]
  %v29 = vld [vmem:[%s1 + $0x4] sm:$0xf]
  %v30 = vld [vmem:[%s1 + $0x8] sm:$0xf]
  %v31 = vld [vmem:[%s2] sm:$0xff]
  %v32 = vld [vmem:[%s2 + $0x8] sm:$0xff]
  %v33 = vld [vmem:[%s2 + $0x10] sm:$0xff]
  %35 = vset.pattern.permute.xlu0 0
  %36 = vperm.xlu0 %35, %v31
  %v37 = vpop.permute.xlu0 %36
  %40 = vset.pattern.permute.xlu0 0
  %41 = vperm.xlu0 %40, %v32
  %v42 = vpop.permute.xlu0 %41
  %45 = vset.pattern.permute.xlu0 0
  %46 = vperm.xlu0 %45, %v33
  %v47 = vpop.permute.xlu0 %46
  %v52 = vunpack.c.l.b16 %v28
  %v53 = vunpack.c.l.b16 %v29
  %v54 = vunpack.c.l.b16 %v30
  %v55 = vpack.c.b16 %v53, %v52
  %v56 = vpack.c.b16 %v54, %v54
  %vm57 = vcmask 31744
  %v59 = vsel %vm57, %v55, 0
  %v62 = vsel %vm57, %v56, 0
  %vm64 = vcmask 1041408
  %v66 = vsel %vm64, %v27, 0
  %68 = vmatprep.subr.bf16.mxu0 0
  %69 = vmatpush1.bf16.msra.mxu0 %v66
  %70 = vmatprep.subr.bf16.mxu0 0
  %71 = vmatpush1.bf16.msra.mxu0 0
  %72 = vmatprep.subr.bf16.mxu0 0
  %73 = vmatpush1.bf16.msra.mxu0 0
  %74 = vmatprep.subr.bf16.mxu0 0
  %75 = vmatpush1.bf16.msra.mxu0 0
  %76 = vmatprep.subr.bf16.mxu0 0
  %77 = vmatpush1.bf16.msra.mxu0 0
  %78 = vmatprep.subr.bf16.mxu0 0
  %79 = vmatpush1.bf16.msra.mxu0 0
  %80 = vmatprep.subr.bf16.mxu0 0
  %81 = vmatpush1.bf16.msra.mxu0 0
  %82 = vmatprep.subr.bf16.mxu0 0
  %83 = vmatpush1.bf16.msra.mxu0 0
  %84 = vmatprep.subr.bf16.mxu0 0
  %85 = vmatpush1.bf16.msra.mxu0 0
  %86 = vmatprep.subr.bf16.mxu0 0
  %87 = vmatpush1.bf16.msra.mxu0 0
  %88 = vmatprep.subr.bf16.mxu0 0
  %89 = vmatpush1.bf16.msra.mxu0 0
  %90 = vmatprep.subr.bf16.mxu0 0
  %91 = vmatpush1.bf16.msra.mxu0 0
  %92 = vmatprep.subr.bf16.mxu0 0
  %93 = vmatpush1.bf16.msra.mxu0 0
  %94 = vmatprep.subr.bf16.mxu0 0
  %95 = vmatpush1.bf16.msra.mxu0 0
  %96 = vmatprep.subr.bf16.mxu0 0
  %97 = vmatpush1.bf16.msra.mxu0 0
  %98 = vmatprep.subr.bf16.mxu0 0
  %99 = vmatpush1.bf16.msra.mxu0 0
  %100 = vmatprep.mubr.bf16.mxu0 0
  %101 = vmatmul.mubr.bf16.gmra.mrb[0].mxu0 %v59
  %v102 = vpop.f32.mrb[0].mxu0
  %v103 = vadd.f32 %v37, %v102
  %v104 = vpop.f32.mrb[0].mxu0
  %v105 = vpop.f32.mrb[0].mxu0
  %v106 = vadd.f32 %v42, %v105
  %v107 = vpop.f32.mrb[0].mxu0
  %108 = vmatprep.mubr.bf16.mxu0 0
  %109 = vmatmul.mubr.bf16.gmra.mrb[0].mxu0 %v62
  %v110 = vpop.f32.mrb[0].mxu0
  %v111 = vadd.f32 %v47, %v110
  %v112 = vpop.f32.mrb[0].mxu0
  %v113 = vpop.f32.mrb[0].mxu0
  %v114 = vpop.f32.mrb[0].mxu0
  %115 = vdwg.mxu0
  %v116 = vmax.f32 %v103, 0.0
  %v117 = vmax.f32 %v106, 0.0
  %v118 = vmax.f32 %v111, 0.0
  %v119 = vld [vmem:[%s3] sm:$0xf]
  %v120 = vld [vmem:[%s3 + $0x4] sm:$0xf]
  %v121 = vpack.c.bf16 %v117, %v116
  %v122 = vpack.c.bf16 %v118, %v118
  %v123 = vld [vmem:[%s4] sm:$0xff]
  %v124 = vld [vmem:[%s4 + $0x8] sm:$0xff]
  %126 = vset.pattern.permute.xlu0 0
  %127 = vperm.xlu0 %126, %v123
  %v128 = vpop.permute.xlu0 %127
  %131 = vset.pattern.permute.xlu0 0
  %132 = vperm.xlu0 %131, %v124
  %v133 = vpop.permute.xlu0 %132
  %v137 = vunpack.c.l.b16 %v119
  %v138 = vunpack.c.l.b16 %v120
  %v139 = vpack.c.b16 %v138, %v137
  %vm140 = vcmask 195584
  %v142 = vsel %vm140, %v139, 0
  %vm144 = vcmask 1043456
  %v146 = vsel %vm144, %v122, 0
  %148 = vmatprep.subr.bf16.mxu0 0
  %149 = vmatpush1.bf16.msra.mxu0 %v121
  %150 = vmatprep.subr.bf16.mxu0 0
  %151 = vmatpush1.bf16.msra.mxu0 %v146
  %152 = vmatprep.subr.bf16.mxu0 0
  %153 = vmatpush1.bf16.msra.mxu0 0
  %154 = vmatprep.subr.bf16.mxu0 0
  %155 = vmatpush1.bf16.msra.mxu0 0
  %156 = vmatprep.subr.bf16.mxu0 0
  %157 = vmatpush1.bf16.msra.mxu0 0
  %158 = vmatprep.subr.bf16.mxu0 0
  %159 = vmatpush1.bf16.msra.mxu0 0
  %160 = vmatprep.subr.bf16.mxu0 0
  %161 = vmatpush1.bf16.msra.mxu0 0
  %162 = vmatprep.subr.bf16.mxu0 0
  %163 = vmatpush1.bf16.msra.mxu0 0
  %164 = vmatprep.subr.bf16.mxu0 0
  %165 = vmatpush1.bf16.msra.mxu0 0
  %166 = vmatprep.subr.bf16.mxu0 0
  %167 = vmatpush1.bf16.msra.mxu0 0
  %168 = vmatprep.subr.bf16.mxu0 0
  %169 = vmatpush1.bf16.msra.mxu0 0
  %170 = vmatprep.subr.bf16.mxu0 0
  %171 = vmatpush1.bf16.msra.mxu0 0
  %172 = vmatprep.subr.bf16.mxu0 0
  %173 = vmatpush1.bf16.msra.mxu0 0
  %174 = vmatprep.subr.bf16.mxu0 0
  %175 = vmatpush1.bf16.msra.mxu0 0
  %176 = vmatprep.subr.bf16.mxu0 0
  %177 = vmatpush1.bf16.msra.mxu0 0
  %178 = vmatprep.subr.bf16.mxu0 0
  %179 = vmatpush1.bf16.msra.mxu0 0
  %180 = vmatprep.mubr.bf16.mxu0 0
  %181 = vmatmul.mubr.bf16.gmra.mrb[0].mxu0 %v142
  %v182 = vpop.f32.mrb[0].mxu0
  %v183 = vadd.f32 %v128, %v182
  %v184 = vpop.f32.mrb[0].mxu0
  %v185 = vpop.f32.mrb[0].mxu0
  %v186 = vadd.f32 %v133, %v185
  %v187 = vpop.f32.mrb[0].mxu0
  %188 = vdwg.mxu0
  %v189 = vmax.f32 %v183, 0.0
  %v190 = vmax.f32 %v186, 0.0
  %v191 = vld [vmem:[%s5] sm:$0x1]
  %v192 = vpack.c.bf16 %v190, %v189
  %v193 = vld [vmem:[%s6] sm:$0x3]
  %195 = vset.pattern.permute.xlu0 0
  %196 = vperm.xlu0 %195, %v193
  %v197 = vpop.permute.xlu0 %196
  %vm199 = vcmask 130048
  %v201 = vsel %vm199, %v191, 0
  %203 = vmatprep.subr.bf16.mxu0 0
  %204 = vmatpush1.bf16.msra.mxu0 %v192
  %205 = vmatprep.subr.bf16.mxu0 0
  %206 = vmatpush1.bf16.msra.mxu0 0
  %207 = vmatprep.subr.bf16.mxu0 0
  %208 = vmatpush1.bf16.msra.mxu0 0
  %209 = vmatprep.subr.bf16.mxu0 0
  %210 = vmatpush1.bf16.msra.mxu0 0
  %211 = vmatprep.subr.bf16.mxu0 0
  %212 = vmatpush1.bf16.msra.mxu0 0
  %213 = vmatprep.subr.bf16.mxu0 0
  %214 = vmatpush1.bf16.msra.mxu0 0
  %215 = vmatprep.subr.bf16.mxu0 0
  %216 = vmatpush1.bf16.msra.mxu0 0
  %217 = vmatprep.subr.bf16.mxu0 0
  %218 = vmatpush1.bf16.msra.mxu0 0
  %219 = vmatprep.subr.bf16.mxu0 0
  %220 = vmatpush1.bf16.msra.mxu0 0
  %221 = vmatprep.subr.bf16.mxu0 0
  %222 = vmatpush1.bf16.msra.mxu0 0
  %223 = vmatprep.subr.bf16.mxu0 0
  %224 = vmatpush1.bf16.msra.mxu0 0
  %225 = vmatprep.subr.bf16.mxu0 0
  %226 = vmatpush1.bf16.msra.mxu0 0
  %227 = vmatprep.subr.bf16.mxu0 0
  %228 = vmatpush1.bf16.msra.mxu0 0
  %229 = vmatprep.subr.bf16.mxu0 0
  %230 = vmatpush1.bf16.msra.mxu0 0
  %231 = vmatprep.subr.bf16.mxu0 0
  %232 = vmatpush1.bf16.msra.mxu0 0
  %233 = vmatprep.subr.bf16.mxu0 0
  %234 = vmatpush1.bf16.msra.mxu0 0
  %235 = vmatprep.mubr.bf16.mxu0 0
  %236 = vmatmul.mubr.bf16.gmra.mrb[0].mxu0 %v201
  %v237 = vpop.f32.mrb[0].mxu0
  %v238 = vadd.f32 %v197, %v237
  %v239 = vpop.f32.mrb[0].mxu0
  %v240 = vpop.f32.mrb[0].mxu0
  %v241 = vpop.f32.mrb[0].mxu0
  %242 = vdwg.mxu0
  %243 = vst [vmem:[%s7] sm:$0x3] %v238
  // Predicated region
  $region30: #{network_forward.1} parent=0 // pred_check
    _
  $region31: #{network_forward.1} parent=0 // pred_check_branch
    %245 = sbr.rel (0) target = $region33
  $region32: #{network_forward.1} parent=0 // pred_region
    _
  $region33: #{network_forward.1} parent=0 // pred_fallthru
    _
  // Predicated region
  $region34: #{network_forward.1} parent=0 // pred_check
    _
  $region35: #{network_forward.1} parent=0 // pred_check_branch
    %247 = sbr.rel (0) target = $region37
  $region36: #{network_forward.1} parent=0 // pred_region
    _
  $region37: #{network_forward.1} parent=0 // pred_fallthru
    _

</llo_original>
